<compile_context>
chip_gen: v7x
topology: tpu7x:2x2x1
jax: 0.10.0
libtpu: 0.0.40
codegen_flags: <defaults>
</compile_context>

<pallas_src>
import functools

import jax
import jax.numpy as jnp
import numpy as np
from jax.experimental import pallas as pl
from jax.experimental.pallas import tpu as pltpu


def _pooling_kernel(tb, seq_len, out_dim, eps, approx_recip,
                    x_ref, xcls_ref, mask_ref,
                    wq_ref, bq_ref, wk_ref, wv_ref,
                    wo_ref, bo_ref, gamma_ref, beta_ref,
                    out_ref):
    """One grid step == TB sequences.

    x_ref:    (1, TB*S, E)   all tokens (flattened host-side), compute dtype
    xcls_ref: (1, TB, E)     CLS token (position 0) of each sequence, compute dtype
    mask_ref: (1, TB, 1, S)  attention mask (1 valid / 0 pad), int32
    wq_ref:   (E, E) scaled query weight;  bq_ref: (1, E) scaled query bias (f32)
    wk_ref:   (E, E) key weight (bias folded out);  wv_ref: (E, E) value weight (bias folded)
    wo_ref:   (E, Opad);  bo_ref/gamma_ref/beta_ref: (1, Opad) f32, zero-padded past out_dim
    out_ref:  (1, TB, Opad)  pooled sequence embeddings, f32
    """
    x2 = x_ref[0]          # (TB*S, E)
    x_cls = xcls_ref[0]    # (TB, E)
    mask = mask_ref[0]     # (TB, 1, S)

    # K projection over all tokens: one lane/sublane-dense MXU matmul, f32 accumulate.
    k = jnp.dot(x2, wk_ref[...], preferred_element_type=jnp.float32)        # (TB*S, E)
    k3 = k.reshape(tb, seq_len, k.shape[-1])                                 # (TB, S, E)

    # Q projection for the CLS rows only (1/sqrt(E) folded into wq/bq host-side).
    q = jnp.dot(x_cls, wq_ref[...], preferred_element_type=jnp.float32) + bq_ref[...]
    q3 = q.reshape(tb, 1, q.shape[-1])                                       # (TB, 1, E)

    # Block-diagonal scores: one batched contraction over E -> (TB, 1, S).
    scores = jnp.einsum("bqe,bke->bqk", q3, k3,
                        preferred_element_type=jnp.float32)
    scores = jnp.where(mask == 0, -1e9, scores)

    m = jnp.max(scores, axis=-1, keepdims=True)
    e = jnp.exp(scores - m)                                                  # (TB, 1, S)
    denom = jnp.sum(e, axis=-1, keepdims=True)                               # (TB, 1, 1)

    # V projection deferred here so k and v are never simultaneously live (bv folded out).
    v = jnp.dot(x2, wv_ref[...], preferred_element_type=jnp.float32)         # (TB*S, E)
    v3 = v.reshape(tb, seq_len, v.shape[-1])                                 # (TB, S, E)

    # Context; normalize after the value matmul (one small (TB, E) scale).
    ctx = jnp.einsum("bqk,bke->bqe", e, v3,
                     preferred_element_type=jnp.float32)                     # (TB, 1, E)
    if approx_recip:
        ctx = ctx * pl.reciprocal(denom, approx=True)
    else:
        ctx = ctx / denom
    ctx = ctx.reshape(tb, ctx.shape[-1])                                     # (TB, E)

    # Output projection -> LayerNorm (stats over the true out_dim cols) -> ReLU.
    y = jnp.dot(ctx.astype(wo_ref.dtype), wo_ref[...],
                preferred_element_type=jnp.float32) + bo_ref[...]            # (TB, Opad)
    if y.shape[-1] == out_dim:
        mu = jnp.mean(y, axis=-1, keepdims=True)
        var = jnp.mean((y - mu) ** 2, axis=-1, keepdims=True)
    else:
        col = jax.lax.broadcasted_iota(jnp.int32, y.shape, 1)
        valid = col < out_dim
        inv_n = 1.0 / out_dim
        mu = jnp.sum(jnp.where(valid, y, 0.0), axis=-1, keepdims=True) * inv_n
        d = jnp.where(valid, y - mu, 0.0)
        var = jnp.sum(d * d, axis=-1, keepdims=True) * inv_n
    yn = (y - mu) * jax.lax.rsqrt(var + eps)
    yn = yn * gamma_ref[...] + beta_ref[...]
    out_ref[0] = jnp.maximum(yn, 0.0)


def _tpu_vmem_and_cores():
    """Best-effort (VMEM capacity bytes, TensorCores per chip)."""
    vmem_bytes = 64 * 2**20
    n_cores = 1
    try:
        info = pltpu.get_tpu_info()
        vmem_bytes = int(getattr(info, "vmem_capacity_bytes", vmem_bytes))
        n_cores = int(getattr(info, "num_cores", getattr(info, "num_tensorcores", 1)))
    except Exception:
        pass
    if n_cores <= 1:
        try:
            kind = jax.devices()[0].device_kind.lower()
            if ("v4" in kind) or ("v5p" in kind) or ("v7" in kind):
                n_cores = 2
        except Exception:
            pass
    return vmem_bytes, max(1, n_cores)


def protein_embedding_pooling(embeddings, attention_mask, params, *, tb=None,
                              compute_dtype=jnp.bfloat16):
    """Pallas wrapper. embeddings: [B, S, E], attention_mask: [B, S] -> [B, O] f32."""
    B, S, E = embeddings.shape
    O = params["wo"].shape[1]
    O_pad = max(128, ((O + 127) // 128) * 128)
    eps = 1e-5
    scale = float(E) ** -0.5
    f32 = jnp.float32
    itemsize = jnp.dtype(compute_dtype).itemsize
    approx_recip = jnp.dtype(compute_dtype) != jnp.dtype(jnp.float32)

    # ---- host-side parameter prep (one-off, free relative to the kernel) ----
    wq = (params["wq"].astype(f32) * scale).astype(compute_dtype)   # scale folded into Q
    bq = params["bq"].astype(f32) * scale
    wk = params["wk"].astype(compute_dtype)                         # bk dropped (shift-invariant)
    wv = params["wv"].astype(compute_dtype)
    wo_f32 = params["wo"].astype(f32)
    bo_eff = params["bv"].astype(f32) @ wo_f32 + params["bo"].astype(f32)  # bv folded into bo
    gamma = params["gamma"].astype(f32)
    beta = params["beta"].astype(f32)
    if O_pad != O:
        pad = ((0, 0), (0, O_pad - O))
        wo_f32 = jnp.pad(wo_f32, pad)
        bo_eff = jnp.pad(bo_eff, pad)
        gamma = jnp.pad(gamma, pad)
        beta = jnp.pad(beta, pad)
    wo = wo_f32.astype(compute_dtype)

    # ---- generation-aware tile-size heuristic: target ~65% of device VMEM ----
    vmem_cap, n_cores = _tpu_vmem_and_cores()
    w_bytes = itemsize * (3 * E * E + E * O_pad) + 4 * (E + 3 * O_pad)  # single-buffered weights
    per_seq = (2 * S * E * itemsize          # token slab (double-buffered)
               + 2 * E * itemsize            # CLS slab (double-buffered)
               + 2 * S * 4                   # mask
               + 2 * S * E * 4               # k / v f32 intermediates (+slack)
               + 8 * E * 4 + 6 * O_pad * 4)  # q / ctx / y / out & friends
    if tb is None:
        budget = int(0.65 * vmem_cap) - w_bytes
        tb = max(1, budget // per_seq)
        if n_cores >= 2 and B > 1:
            # Only split for megacore parts; on single-TC chips the grid is a serial loop.
            tb = min(tb, pl.cdiv(B, n_cores))
    tb = int(max(1, min(tb, B)))
    nb = pl.cdiv(B, tb)
    b_pad = nb * tb

    x = embeddings.astype(compute_dtype)
    mask = attention_mask.astype(jnp.int32)
    if b_pad != B:
        x = jnp.pad(x, ((0, b_pad - B), (0, 0), (0, 0)))
        mask = jnp.pad(mask, ((0, b_pad - B), (0, 0)))

    # Host-side (free) layout prep: flattened token slab, CLS slab, mask.
    x_tok = x.reshape(nb, tb * S, E)
    x_cls = x[:, 0, :].reshape(nb, tb, E)
    mask4 = mask.reshape(nb, tb, 1, S)

    est = w_bytes + tb * per_seq + 2 * tb * O_pad * 4
    vmem_limit = int(max(32 * 2**20, min(0.85 * vmem_cap, 1.5 * est)))

    kernel = functools.partial(_pooling_kernel, tb, S, O, eps, approx_recip)

    def const_spec(shape):
        # Grid-invariant operand: single-buffer it (no benefit from double-buffering).
        return pl.BlockSpec(shape, lambda b: (0,) * len(shape),
                            pipeline_mode=pl.Buffered(1))

    out = pl.pallas_call(
        kernel,
        out_shape=jax.ShapeDtypeStruct((nb, tb, O_pad), jnp.float32),
        grid_spec=pltpu.PrefetchScalarGridSpec(
            num_scalar_prefetch=0,
            grid=(nb,),
            in_specs=[
                pl.BlockSpec((1, tb * S, E), lambda b: (b, 0, 0)),     # all tokens
                pl.BlockSpec((1, tb, E), lambda b: (b, 0, 0)),         # CLS tokens
                pl.BlockSpec((1, tb, 1, S), lambda b: (b, 0, 0, 0)),   # mask
                const_spec((E, E)), const_spec((1, E)),                # wq (scaled), bq (scaled)
                const_spec((E, E)),                                    # wk (bias dropped)
                const_spec((E, E)),                                    # wv (bias folded)
                const_spec((E, O_pad)), const_spec((1, O_pad)),        # wo, bo' (= bv@wo + bo)
                const_spec((1, O_pad)), const_spec((1, O_pad)),        # gamma, beta
            ],
            out_specs=pl.BlockSpec((1, tb, O_pad), lambda b: (b, 0, 0)),
        ),
        compiler_params=pltpu.CompilerParams(
            dimension_semantics=("parallel",),
            vmem_limit_bytes=vmem_limit,
        ),
    )(x_tok, x_cls, mask4, wq, bq, wk, wv, wo, bo_eff, gamma, beta)

    return out.reshape(b_pad, O_pad)[:B, :O]


def init_params(key, embedding_dim, output_dim):
    """Deterministic init, PyTorch-Linear-style uniform(-1/sqrt(fan_in), 1/sqrt(fan_in)).
    Weights stored as [in, out] (transposed relative to torch's [out, in])."""
    E, O = embedding_dim, output_dim
    keys = jax.random.split(key, 8)

    def lin(kw, kb, din, dout):
        bnd = 1.0 / np.sqrt(din)
        w = jax.random.uniform(kw, (din, dout), jnp.float32, -bnd, bnd)
        b = jax.random.uniform(kb, (1, dout), jnp.float32, -bnd, bnd)
        return w, b

    wq, bq = lin(keys[0], keys[1], E, E)
    wk, bk = lin(keys[2], keys[3], E, E)
    wv, bv = lin(keys[4], keys[5], E, E)
    wo, bo = lin(keys[6], keys[7], E, O)
    return {
        "wq": wq, "bq": bq, "wk": wk, "bk": bk, "wv": wv, "bv": bv,
        "wo": wo, "bo": bo,
        "gamma": jnp.ones((1, O), jnp.float32),   # LayerNorm weight
        "beta": jnp.zeros((1, O), jnp.float32),   # LayerNorm bias
    }


def reference(embeddings, attention_mask, params):
    """Pure-JAX f32 reference mirroring the PyTorch forward (eval mode)."""
    B, S, E = embeddings.shape
    scale = float(E) ** -0.5
    q = embeddings @ params["wq"] + params["bq"]
    k = embeddings @ params["wk"] + params["bk"]
    v = embeddings @ params["wv"] + params["bv"]
    scores = jnp.einsum("bqe,bke->bqk", q, k) * scale
    mask = attention_mask[:, None, :]
    scores = jnp.where(mask == 0, -1e9, scores)
    w = jax.nn.softmax(scores, axis=-1)
    ctx = jnp.einsum("bqk,bke->bqe", w, v)
    seq = ctx[:, 0, :]
    y = seq @ params["wo"] + params["bo"]
    mu = jnp.mean(y, axis=-1, keepdims=True)
    var = jnp.mean((y - mu) ** 2, axis=-1, keepdims=True)
    yn = (y - mu) / jnp.sqrt(var + 1e-5)
    yn = yn * params["gamma"] + params["beta"]
    return jnp.maximum(yn, 0.0)


if __name__ == "__main__":
    B, S, E, O = 2, 8, 32, 32
    key = jax.random.PRNGKey(0)
    k_x, k_p = jax.random.split(key)

    embeddings = jax.random.normal(k_x, (B, S, E), jnp.float32)
    # mask: first sequence fully valid, second has 3 padding tokens at the end
    attention_mask = jnp.array(
        [[1] * S, [1] * (S - 3) + [0] * 3], dtype=jnp.float32
    )

    params = init_params(k_p, E, O)
    ref = reference(embeddings, attention_mask, params)

    # f32 verification path (tight tolerance).
    out32 = protein_embedding_pooling(embeddings, attention_mask, params,
                                      compute_dtype=jnp.float32)
    out32 = jax.block_until_ready(out32)
    np.testing.assert_allclose(np.asarray(out32), np.asarray(ref), rtol=2e-5, atol=2e-5)

    # Default bf16 fast path (loose tolerance, f32 accumulation).
    out16 = protein_embedding_pooling(embeddings, attention_mask, params)
    out16 = jax.block_until_ready(out16)
    np.testing.assert_allclose(np.asarray(out16), np.asarray(ref), rtol=3e-2, atol=3e-2)

    print("KERNEL_OK")
</pallas_src>

<mosaic_0001>
module attributes {stable_mosaic.version = 11 : i64} {
  func.func @_pooling_kernel(%arg0: i32, %arg1: memref<1x16x32xf32, #tpu.memory_space<vmem>>, %arg2: memref<1x2x32xf32, #tpu.memory_space<vmem>>, %arg3: memref<1x2x1x8xi32, #tpu.memory_space<vmem>>, %arg4: memref<32x32xf32, #tpu.memory_space<vmem>>, %arg5: memref<1x32xf32, #tpu.memory_space<vmem>>, %arg6: memref<32x32xf32, #tpu.memory_space<vmem>>, %arg7: memref<32x32xf32, #tpu.memory_space<vmem>>, %arg8: memref<32x128xf32, #tpu.memory_space<vmem>>, %arg9: memref<1x128xf32, #tpu.memory_space<vmem>>, %arg10: memref<1x128xf32, #tpu.memory_space<vmem>>, %arg11: memref<1x128xf32, #tpu.memory_space<vmem>>, %arg12: memref<1x2x128xf32, #tpu.memory_space<vmem>>) attributes {dimension_semantics = [#tpu.dimension_semantics<parallel>], iteration_bounds = array<i64: 1>, scalar_prefetch = 0 : i64, scratch_operands = 0 : i64, tpu.core_type = #tpu.core_type<tc>, window_params = [{transform_indices = @transform_0, window_bounds = array<i64: 1, 16, 32>}, {transform_indices = @transform_1, window_bounds = array<i64: 1, 2, 32>}, {transform_indices = @transform_2, window_bounds = array<i64: 1, 2, 1, 8>}, {pipeline_mode = #tpu.pipeline_mode<synchronous>, transform_indices = @transform_3, window_bounds = array<i64: 32, 32>}, {pipeline_mode = #tpu.pipeline_mode<synchronous>, transform_indices = @transform_4, window_bounds = array<i64: 1, 32>}, {pipeline_mode = #tpu.pipeline_mode<synchronous>, transform_indices = @transform_5, window_bounds = array<i64: 32, 32>}, {pipeline_mode = #tpu.pipeline_mode<synchronous>, transform_indices = @transform_6, window_bounds = array<i64: 32, 32>}, {pipeline_mode = #tpu.pipeline_mode<synchronous>, transform_indices = @transform_7, window_bounds = array<i64: 32, 128>}, {pipeline_mode = #tpu.pipeline_mode<synchronous>, transform_indices = @transform_8, window_bounds = array<i64: 1, 128>}, {pipeline_mode = #tpu.pipeline_mode<synchronous>, transform_indices = @transform_9, window_bounds = array<i64: 1, 128>}, {pipeline_mode = #tpu.pipeline_mode<synchronous>, transform_indices = @transform_10, window_bounds = array<i64: 1, 128>}, {transform_indices = @transform_11, window_bounds = array<i64: 1, 2, 128>}]} {
    %c0 = arith.constant 0 : index
    %c0_0 = arith.constant 0 : index
    %c0_1 = arith.constant 0 : index
    %0 = vector.load %arg1[%c0, %c0_0, %c0_1] : memref<1x16x32xf32, #tpu.memory_space<vmem>>, vector<1x16x32xf32>
    %1 = vector.shape_cast %0 : vector<1x16x32xf32> to vector<16x32xf32>
    %c0_2 = arith.constant 0 : index
    %c0_3 = arith.constant 0 : index
    %c0_4 = arith.constant 0 : index
    %2 = vector.load %arg2[%c0_2, %c0_3, %c0_4] : memref<1x2x32xf32, #tpu.memory_space<vmem>>, vector<1x2x32xf32>
    %3 = vector.shape_cast %2 : vector<1x2x32xf32> to vector<2x32xf32>
    %c0_5 = arith.constant 0 : index
    %c0_6 = arith.constant 0 : index
    %c0_7 = arith.constant 0 : index
    %c0_8 = arith.constant 0 : index
    %4 = vector.load %arg3[%c0_5, %c0_6, %c0_7, %c0_8] : memref<1x2x1x8xi32, #tpu.memory_space<vmem>>, vector<1x2x1x8xi32>
    %5 = vector.shape_cast %4 : vector<1x2x1x8xi32> to vector<2x1x8xi32>
    %c0_9 = arith.constant 0 : index
    %c0_10 = arith.constant 0 : index
    %6 = vector.load %arg6[%c0_9, %c0_10] : memref<32x32xf32, #tpu.memory_space<vmem>>, vector<32x32xf32>
    %cst = arith.constant dense<0.000000e+00> : vector<16x32xf32>
    %7 = tpu.matmul %1, %6, %cst {dimension_numbers = #tpu.dot_dimension_numbers<[1], [0], [0], [1], [0, 0, 1, 1], [], []>} : vector<16x32xf32>, vector<32x32xf32>, vector<16x32xf32> -> vector<16x32xf32>
    %8 = vector.shape_cast %7 : vector<16x32xf32> to vector<2x8x32xf32>
    %c0_11 = arith.constant 0 : index
    %c0_12 = arith.constant 0 : index
    %9 = vector.load %arg4[%c0_11, %c0_12] : memref<32x32xf32, #tpu.memory_space<vmem>>, vector<32x32xf32>
    %cst_13 = arith.constant dense<0.000000e+00> : vector<2x32xf32>
    %10 = tpu.matmul %3, %9, %cst_13 {dimension_numbers = #tpu.dot_dimension_numbers<[1], [0], [0], [1], [0, 0, 1, 1], [], []>} : vector<2x32xf32>, vector<32x32xf32>, vector<2x32xf32> -> vector<2x32xf32>
    %c0_14 = arith.constant 0 : index
    %c0_15 = arith.constant 0 : index
    %11 = vector.load %arg5[%c0_14, %c0_15] : memref<1x32xf32, #tpu.memory_space<vmem>>, vector<1x32xf32>
    %12 = vector.broadcast %11 : vector<1x32xf32> to vector<2x32xf32>
    %13 = arith.addf %10, %12 : vector<2x32xf32>
    %14 = vector.shape_cast %13 : vector<2x32xf32> to vector<2x1x32xf32>
    "tpu.trace_start"() <{level = 10 : i32, message = "bqe,bke->bqk"}> : () -> ()
    %cst_16 = arith.constant dense<0.000000e+00> : vector<2x1x8xf32>
    %15 = tpu.matmul %14, %8, %cst_16 {dimension_numbers = #tpu.dot_dimension_numbers<[2], [2], [1], [1], [0, 0, 0, 1, 1, 1], [0], [0]>} : vector<2x1x32xf32>, vector<2x8x32xf32>, vector<2x1x8xf32> -> vector<2x1x8xf32>
    %c0_i32 = arith.constant 0 : i32
    "tpu.trace_stop"() : () -> ()
    %16 = vector.broadcast %c0_i32 : i32 to vector<2x1x8xi32>
    %17 = arith.cmpi eq, %5, %16 : vector<2x1x8xi32>
    %cst_17 = arith.constant -1.000000e+09 : f32
    %18 = vector.broadcast %cst_17 : f32 to vector<2x1x8xf32>
    %19 = arith.select %17, %18, %15 : vector<2x1x8xi1>, vector<2x1x8xf32>
    %cst_18 = arith.constant dense<0xFF800000> : vector<2x1xf32>
    %20 = vector.multi_reduction <maximumf>, %19, %cst_18 [2] : vector<2x1x8xf32> to vector<2x1xf32>
    %21 = vector.shape_cast %20 : vector<2x1xf32> to vector<2x1x1xf32>
    %22 = vector.broadcast %21 : vector<2x1x1xf32> to vector<2x1x8xf32>
    %23 = arith.subf %19, %22 : vector<2x1x8xf32>
    %24 = math.exp %23 : vector<2x1x8xf32>
    %cst_19 = arith.constant dense<0.000000e+00> : vector<2x1xf32>
    %25 = vector.multi_reduction <add>, %24, %cst_19 [2] : vector<2x1x8xf32> to vector<2x1xf32>
    %26 = vector.shape_cast %25 : vector<2x1xf32> to vector<2x1x1xf32>
    %c0_20 = arith.constant 0 : index
    %c0_21 = arith.constant 0 : index
    %27 = vector.load %arg7[%c0_20, %c0_21] : memref<32x32xf32, #tpu.memory_space<vmem>>, vector<32x32xf32>
    %cst_22 = arith.constant dense<0.000000e+00> : vector<16x32xf32>
    %28 = tpu.matmul %1, %27, %cst_22 {dimension_numbers = #tpu.dot_dimension_numbers<[1], [0], [0], [1], [0, 0, 1, 1], [], []>} : vector<16x32xf32>, vector<32x32xf32>, vector<16x32xf32> -> vector<16x32xf32>
    %29 = vector.shape_cast %28 : vector<16x32xf32> to vector<2x8x32xf32>
    "tpu.trace_start"() <{level = 10 : i32, message = "bqk,bke->bqe"}> : () -> ()
    %cst_23 = arith.constant dense<0.000000e+00> : vector<2x1x32xf32>
    %30 = tpu.matmul %24, %29, %cst_23 {dimension_numbers = #tpu.dot_dimension_numbers<[2], [1], [1], [2], [0, 0, 0, 1, 1, 2], [0], [0]>} : vector<2x1x8xf32>, vector<2x8x32xf32>, vector<2x1x32xf32> -> vector<2x1x32xf32>
    "tpu.trace_stop"() : () -> ()
    %31 = vector.broadcast %26 : vector<2x1x1xf32> to vector<2x1x32xf32>
    %32 = arith.divf %30, %31 : vector<2x1x32xf32>
    %33 = vector.shape_cast %32 : vector<2x1x32xf32> to vector<2x32xf32>
    %c0_24 = arith.constant 0 : index
    %c0_25 = arith.constant 0 : index
    %34 = vector.load %arg8[%c0_24, %c0_25] : memref<32x128xf32, #tpu.memory_space<vmem>>, vector<32x128xf32>
    %cst_26 = arith.constant dense<0.000000e+00> : vector<2x128xf32>
    %35 = tpu.matmul %33, %34, %cst_26 {dimension_numbers = #tpu.dot_dimension_numbers<[1], [0], [0], [1], [0, 0, 1, 1], [], []>} : vector<2x32xf32>, vector<32x128xf32>, vector<2x128xf32> -> vector<2x128xf32>
    %c0_27 = arith.constant 0 : index
    %c0_28 = arith.constant 0 : index
    %36 = vector.load %arg9[%c0_27, %c0_28] : memref<1x128xf32, #tpu.memory_space<vmem>>, vector<1x128xf32>
    %37 = vector.broadcast %36 : vector<1x128xf32> to vector<2x128xf32>
    %38 = arith.addf %35, %37 : vector<2x128xf32>
    %39 = tpu.iota {dimensions = array<i32: 1>} : vector<2x128xi32>
    %c32_i32 = arith.constant 32 : i32
    %40 = vector.broadcast %c32_i32 : i32 to vector<2x128xi32>
    %41 = arith.cmpi slt, %39, %40 : vector<2x128xi32>
    %cst_29 = arith.constant 0.000000e+00 : f32
    %42 = vector.broadcast %cst_29 : f32 to vector<2x128xf32>
    %43 = arith.select %41, %38, %42 : vector<2x128xi1>, vector<2x128xf32>
    %cst_30 = arith.constant dense<0.000000e+00> : vector<2xf32>
    %44 = vector.multi_reduction <add>, %43, %cst_30 [1] : vector<2x128xf32> to vector<2xf32>
    %45 = vector.shape_cast %44 : vector<2xf32> to vector<2x1xf32>
    %cst_31 = arith.constant 3.125000e-02 : f32
    %46 = vector.broadcast %cst_31 : f32 to vector<2x1xf32>
    %47 = arith.mulf %45, %46 : vector<2x1xf32>
    %48 = vector.broadcast %47 : vector<2x1xf32> to vector<2x128xf32>
    %49 = arith.subf %38, %48 : vector<2x128xf32>
    %cst_32 = arith.constant 0.000000e+00 : f32
    %50 = vector.broadcast %cst_32 : f32 to vector<2x128xf32>
    %51 = arith.select %41, %49, %50 : vector<2x128xi1>, vector<2x128xf32>
    %52 = arith.mulf %51, %51 : vector<2x128xf32>
    %cst_33 = arith.constant dense<0.000000e+00> : vector<2xf32>
    %53 = vector.multi_reduction <add>, %52, %cst_33 [1] : vector<2x128xf32> to vector<2xf32>
    %54 = vector.shape_cast %53 : vector<2xf32> to vector<2x1xf32>
    %cst_34 = arith.constant 3.125000e-02 : f32
    %55 = vector.broadcast %cst_34 : f32 to vector<2x1xf32>
    %56 = arith.mulf %54, %55 : vector<2x1xf32>
    %57 = vector.broadcast %47 : vector<2x1xf32> to vector<2x128xf32>
    %58 = arith.subf %38, %57 : vector<2x128xf32>
    %cst_35 = arith.constant 9.99999974E-6 : f32
    %59 = vector.broadcast %cst_35 : f32 to vector<2x1xf32>
    %60 = arith.addf %56, %59 : vector<2x1xf32>
    %61 = math.rsqrt %60 : vector<2x1xf32>
    %62 = vector.broadcast %61 : vector<2x1xf32> to vector<2x128xf32>
    %63 = arith.mulf %58, %62 : vector<2x128xf32>
    %c0_36 = arith.constant 0 : index
    %c0_37 = arith.constant 0 : index
    %64 = vector.load %arg10[%c0_36, %c0_37] : memref<1x128xf32, #tpu.memory_space<vmem>>, vector<1x128xf32>
    %65 = vector.broadcast %64 : vector<1x128xf32> to vector<2x128xf32>
    %66 = arith.mulf %63, %65 : vector<2x128xf32>
    %c0_38 = arith.constant 0 : index
    %c0_39 = arith.constant 0 : index
    %67 = vector.load %arg11[%c0_38, %c0_39] : memref<1x128xf32, #tpu.memory_space<vmem>>, vector<1x128xf32>
    %68 = vector.broadcast %67 : vector<1x128xf32> to vector<2x128xf32>
    %69 = arith.addf %66, %68 : vector<2x128xf32>
    %cst_40 = arith.constant 0.000000e+00 : f32
    %70 = vector.broadcast %cst_40 : f32 to vector<2x128xf32>
    %71 = arith.maximumf %69, %70 : vector<2x128xf32>
    %c0_41 = arith.constant 0 : index
    %c0_42 = arith.constant 0 : index
    %c0_43 = arith.constant 0 : index
    %72 = vector.load %arg12[%c0_41, %c0_42, %c0_43] : memref<1x2x128xf32, #tpu.memory_space<vmem>>, vector<1x2x128xf32>
    %73 = vector.shape_cast %72 : vector<1x2x128xf32> to vector<2x128xf32>
    %74 = vector.shape_cast %71 : vector<2x128xf32> to vector<1x2x128xf32>
    tpu.vector_store %arg12[%c0_41, %c0_42, %c0_43], %74 {strides = array<i32>} : memref<1x2x128xf32, #tpu.memory_space<vmem>>, vector<1x2x128xf32>,
    return
  }
  func.func @transform_0(%arg0: i32) -> (i32, i32, i32) {
    %c0_i32 = arith.constant 0 : i32
    %c0_i32_0 = arith.constant 0 : i32
    %c0_i32_1 = arith.constant 0 : i32
    return %arg0, %c0_i32, %c0_i32_0 : i32, i32, i32
  }
  func.func @transform_1(%arg0: i32) -> (i32, i32, i32) {
    %c0_i32 = arith.constant 0 : i32
    %c0_i32_0 = arith.constant 0 : i32
    %c0_i32_1 = arith.constant 0 : i32
    return %arg0, %c0_i32, %c0_i32_0 : i32, i32, i32
  }
  func.func @transform_2(%arg0: i32) -> (i32, i32, i32, i32) {
    %c0_i32 = arith.constant 0 : i32
    %c0_i32_0 = arith.constant 0 : i32
    %c0_i32_1 = arith.constant 0 : i32
    %c0_i32_2 = arith.constant 0 : i32
    return %arg0, %c0_i32, %c0_i32_0, %c0_i32_1 : i32, i32, i32, i32
  }
  func.func @transform_3(%arg0: i32) -> (i32, i32) {
    %c0_i32 = arith.constant 0 : i32
    %c0_i32_0 = arith.constant 0 : i32
    %c0_i32_1 = arith.constant 0 : i32
    return %c0_i32, %c0_i32_0 : i32, i32
  }
  func.func @transform_4(%arg0: i32) -> (i32, i32) {
    %c0_i32 = arith.constant 0 : i32
    %c0_i32_0 = arith.constant 0 : i32
    %c0_i32_1 = arith.constant 0 : i32
    return %c0_i32, %c0_i32_0 : i32, i32
  }
  func.func @transform_5(%arg0: i32) -> (i32, i32) {
    %c0_i32 = arith.constant 0 : i32
    %c0_i32_0 = arith.constant 0 : i32
    %c0_i32_1 = arith.constant 0 : i32
    return %c0_i32, %c0_i32_0 : i32, i32
  }
  func.func @transform_6(%arg0: i32) -> (i32, i32) {
    %c0_i32 = arith.constant 0 : i32
    %c0_i32_0 = arith.constant 0 : i32
    %c0_i32_1 = arith.constant 0 : i32
    return %c0_i32, %c0_i32_0 : i32, i32
  }
  func.func @transform_7(%arg0: i32) -> (i32, i32) {
    %c0_i32 = arith.constant 0 : i32
    %c0_i32_0 = arith.constant 0 : i32
    %c0_i32_1 = arith.constant 0 : i32
    return %c0_i32, %c0_i32_0 : i32, i32
  }
  func.func @transform_8(%arg0: i32) -> (i32, i32) {
    %c0_i32 = arith.constant 0 : i32
    %c0_i32_0 = arith.constant 0 : i32
    %c0_i32_1 = arith.constant 0 : i32
    return %c0_i32, %c0_i32_0 : i32, i32
  }
  func.func @transform_9(%arg0: i32) -> (i32, i32) {
    %c0_i32 = arith.constant 0 : i32
    %c0_i32_0 = arith.constant 0 : i32
    %c0_i32_1 = arith.constant 0 : i32
    return %c0_i32, %c0_i32_0 : i32, i32
  }
  func.func @transform_10(%arg0: i32) -> (i32, i32) {
    %c0_i32 = arith.constant 0 : i32
    %c0_i32_0 = arith.constant 0 : i32
    %c0_i32_1 = arith.constant 0 : i32
    return %c0_i32, %c0_i32_0 : i32, i32
  }
  func.func @transform_11(%arg0: i32) -> (i32, i32, i32) {
    %c0_i32 = arith.constant 0 : i32
    %c0_i32_0 = arith.constant 0 : i32
    %c0_i32_1 = arith.constant 0 : i32
    return %arg0, %c0_i32, %c0_i32_0 : i32, i32, i32
  }
}

</mosaic_0001>

<llo_original>
// kernel: tpu_custom_call.1
$region0: #{tpu_custom_call.1}
  #allocation0 [shape = 'u32[]', space=smem, size = 0x4, offset = 0x4, fixed_abs, tag = 'smem constant byte address 0x4 - core index']
  #allocation1 [shape = 'u32[144,128]{1,0:T(1,128)}', space=vmem, size = 0x12000, scoped, tag = 'internal scratch']
  %s0 = inlined_call_operand.hbm [shape: f32[1,16,32], index: 0, kind: input, shape index: {}]
  %s1 = inlined_call_operand.vmem [shape: f32[1,2,32], index: 1, kind: input, shape index: {}]
  %s2 = inlined_call_operand.vmem [shape: s32[1,2,1,8], index: 2, kind: input, shape index: {}]
  %s3 = inlined_call_operand.hbm [shape: f32[32,32], index: 3, kind: input, shape index: {}]
  %s4 = inlined_call_operand.vmem [shape: f32[1,32], index: 4, kind: input, shape index: {}]
  %s5 = inlined_call_operand.hbm [shape: f32[32,32], index: 5, kind: input, shape index: {}]
  %s6 = inlined_call_operand.hbm [shape: f32[32,32], index: 6, kind: input, shape index: {}]
  %s7 = inlined_call_operand.hbm [shape: f32[32,128], index: 7, kind: input, shape index: {}]
  %s8 = inlined_call_operand.vmem [shape: f32[1,128], index: 8, kind: input, shape index: {}]
  %s9 = inlined_call_operand.vmem [shape: f32[1,128], index: 9, kind: input, shape index: {}]
  %s10 = inlined_call_operand.vmem [shape: f32[1,128], index: 10, kind: input, shape index: {}]
  %s11 = inlined_call_operand.hbm [shape: f32[1,2,128], index: 11, kind: output, shape index: {}]
  %s12 = sld [smem:[#allocation0]]
  $region74: #{tpu_custom_call.1} parent=0
    _
  %s14 = ssub.s32 1, %s12
  %s15 = scalar_select 0, %s14, %s12
  $region1: #{tpu_custom_call.1} parent=0
    #allocation2 [shape = 'u8[8192]{0}', space=vmem, size = 0x2000, scoped, tag = 'input window, operand 0, single buffered']
    #allocation3 [shape = 's32[1]{0}', space=sflag, size = 0x4, scoped, tag = 'scoped memory for tpu_custom_call.1']
    #allocation4 [shape = 's32[1]{0}', space=sflag, size = 0x4, scoped, tag = 'scoped memory for tpu_custom_call.1']
    #allocation5 [shape = 'u8[16384]{0}', space=vmem, size = 0x4000, scoped, tag = 'input window, operand 3, single buffered']
    #allocation6 [shape = 's32[1]{0}', space=sflag, size = 0x4, scoped, tag = 'scoped memory for tpu_custom_call.1']
    #allocation7 [shape = 'u8[16384]{0}', space=vmem, size = 0x4000, scoped, tag = 'input window, operand 5, single buffered']
    #allocation8 [shape = 'u8[16384]{0}', space=vmem, size = 0x4000, scoped, tag = 'input window, operand 6, single buffered']
    #allocation9 [shape = 's32[1]{0}', space=sflag, size = 0x4, scoped, tag = 'scoped memory for tpu_custom_call.1']
    #allocation10 [shape = 'u8[16384]{0}', space=vmem, size = 0x4000, scoped, tag = 'input window, operand 7, single buffered']
    #allocation11 [shape = 'u8[1024]{0}', space=vmem, size = 0x400, scoped, tag = 'output window, operand 0, single buffered']
    %16 = vsyncpa [#allocation3], 0
    %17 = vsyncpa [#allocation6], 0
    %18 = vsyncpa [#allocation9], 0
    %19 = vsyncpa [#allocation4], 0
    // Predicated region
    $region2: #{tpu_custom_call.1} parent=1 // pred_check
      _
    $region3: #{tpu_custom_call.1} parent=1 // pred_check_branch
      %21 = sbr.rel (0) target = $region5
    $region4: #{tpu_custom_call.1} parent=1 // pred_region
      %s23 = ssub.s32 256, 256
      %24 = vsyncadd [#allocation3], %s23
      %s25 = sshll.u32 [#allocation2], 4
      %s26 = int_to_ptr.vmem [resolvable:$true] %s25
      %31 = dma.hbm_to_vmem [thread:$0]  %s0, 256, %s26, [#allocation3], 128, 128, 8
    $region5: #{tpu_custom_call.1} parent=1 // pred_fallthru
      _
    // Predicated region
    $region6: #{tpu_custom_call.1} parent=1 // pred_check
      _
    $region7: #{tpu_custom_call.1} parent=1 // pred_check_branch
      %33 = sbr.rel (0) target = $region9
    $region8: #{tpu_custom_call.1} parent=1 // pred_region
      _
    $region9: #{tpu_custom_call.1} parent=1 // pred_fallthru
      _
    // Predicated region
    $region10: #{tpu_custom_call.1} parent=1 // pred_check
      _
    $region11: #{tpu_custom_call.1} parent=1 // pred_check_branch
      %35 = sbr.rel (0) target = $region13
    $region12: #{tpu_custom_call.1} parent=1 // pred_region
      _
    $region13: #{tpu_custom_call.1} parent=1 // pred_fallthru
      _
    // Predicated region
    $region14: #{tpu_custom_call.1} parent=1 // pred_check
      _
    $region15: #{tpu_custom_call.1} parent=1 // pred_check_branch
      %37 = sbr.rel (0) target = $region17
    $region16: #{tpu_custom_call.1} parent=1 // pred_region
      %s39 = ssub.s32 512, 512
      %40 = vsyncadd [#allocation6], %s39
      %s41 = sshll.u32 [#allocation5], 4
      %s42 = int_to_ptr.vmem [resolvable:$true] %s41
      %47 = dma.hbm_to_vmem [thread:$0]  %s3, 512, %s42, [#allocation6], 128, 128, 8
    $region17: #{tpu_custom_call.1} parent=1 // pred_fallthru
      _
    // Predicated region
    $region18: #{tpu_custom_call.1} parent=1 // pred_check
      _
    $region19: #{tpu_custom_call.1} parent=1 // pred_check_branch
      %49 = sbr.rel (0) target = $region21
    $region20: #{tpu_custom_call.1} parent=1 // pred_region
      _
    $region21: #{tpu_custom_call.1} parent=1 // pred_fallthru
      _
    // Predicated region
    $region22: #{tpu_custom_call.1} parent=1 // pred_check
      _
    $region23: #{tpu_custom_call.1} parent=1 // pred_check_branch
      %51 = sbr.rel (0) target = $region25
    $region24: #{tpu_custom_call.1} parent=1 // pred_region
      %s53 = ssub.s32 512, 512
      %54 = vsyncadd [#allocation6], %s53
      %s55 = sshll.u32 [#allocation7], 4
      %s56 = int_to_ptr.vmem [resolvable:$true] %s55
      %61 = dma.hbm_to_vmem [thread:$0]  %s5, 512, %s56, [#allocation6], 128, 128, 8
    $region25: #{tpu_custom_call.1} parent=1 // pred_fallthru
      _
    // Predicated region
    $region26: #{tpu_custom_call.1} parent=1 // pred_check
      _
    $region27: #{tpu_custom_call.1} parent=1 // pred_check_branch
      %63 = sbr.rel (0) target = $region29
    $region28: #{tpu_custom_call.1} parent=1 // pred_region
      %s65 = ssub.s32 512, 512
      %66 = vsyncadd [#allocation9], %s65
      %s67 = sshll.u32 [#allocation8], 4
      %s68 = int_to_ptr.vmem [resolvable:$true] %s67
      %73 = dma.hbm_to_vmem [thread:$0]  %s6, 512, %s68, [#allocation9], 128, 128, 8
    $region29: #{tpu_custom_call.1} parent=1 // pred_fallthru
      _
    // Predicated region
    $region30: #{tpu_custom_call.1} parent=1 // pred_check
      _
    $region31: #{tpu_custom_call.1} parent=1 // pred_check_branch
      %75 = sbr.rel (0) target = $region33
    $region32: #{tpu_custom_call.1} parent=1 // pred_region
      %s77 = ssub.s32 512, 512
      %78 = vsyncadd [#allocation9], %s77
      %s79 = sshll.u32 [#allocation10], 4
      %s80 = int_to_ptr.vmem [resolvable:$true] %s79
      %85 = dma.hbm_to_vmem [thread:$0]  %s7, 512, %s80, [#allocation9], 128, 128, 8
    $region33: #{tpu_custom_call.1} parent=1 // pred_fallthru
      _
    // Predicated region
    $region34: #{tpu_custom_call.1} parent=1 // pred_check
      _
    $region35: #{tpu_custom_call.1} parent=1 // pred_check_branch
      %87 = sbr.rel (0) target = $region37
    $region36: #{tpu_custom_call.1} parent=1 // pred_region
      _
    $region37: #{tpu_custom_call.1} parent=1 // pred_fallthru
      _
    // Predicated region
    $region38: #{tpu_custom_call.1} parent=1 // pred_check
      _
    $region39: #{tpu_custom_call.1} parent=1 // pred_check_branch
      %89 = sbr.rel (0) target = $region41
    $region40: #{tpu_custom_call.1} parent=1 // pred_region
      _
    $region41: #{tpu_custom_call.1} parent=1 // pred_fallthru
      _
    // Predicated region
    $region42: #{tpu_custom_call.1} parent=1 // pred_check
      _
    $region43: #{tpu_custom_call.1} parent=1 // pred_check_branch
      %91 = sbr.rel (0) target = $region45
    $region44: #{tpu_custom_call.1} parent=1 // pred_region
      _
    $region45: #{tpu_custom_call.1} parent=1 // pred_fallthru
      _
    // Predicated region
    $region46: #{tpu_custom_call.1} parent=1 // pred_check
      _
    $region47: #{tpu_custom_call.1} parent=1 // pred_check_branch
      %93 = sbr.rel (0) target = $region49
    $region48: #{tpu_custom_call.1} parent=1 // pred_region
      %94 = dma.done [#allocation3], 256
    $region49: #{tpu_custom_call.1} parent=1 // pred_fallthru
      _
    // Predicated region
    $region50: #{tpu_custom_call.1} parent=1 // pred_check
      _
    $region51: #{tpu_custom_call.1} parent=1 // pred_check_branch
      %96 = sbr.rel (0) target = $region53
    $region52: #{tpu_custom_call.1} parent=1 // pred_region
      %97 = dma.done [#allocation6], 512
    $region53: #{tpu_custom_call.1} parent=1 // pred_fallthru
      _
    // Predicated region
    $region54: #{tpu_custom_call.1} parent=1 // pred_check
      _
    $region55: #{tpu_custom_call.1} parent=1 // pred_check_branch
      %99 = sbr.rel (0) target = $region57
    $region56: #{tpu_custom_call.1} parent=1 // pred_region
      %100 = dma.done [#allocation6], 512
    $region57: #{tpu_custom_call.1} parent=1 // pred_fallthru
      _
    // Predicated region
    $region58: #{tpu_custom_call.1} parent=1 // pred_check
      _
    $region59: #{tpu_custom_call.1} parent=1 // pred_check_branch
      %102 = sbr.rel (0) target = $region61
    $region60: #{tpu_custom_call.1} parent=1 // pred_region
      %103 = dma.done [#allocation9], 512
    $region61: #{tpu_custom_call.1} parent=1 // pred_fallthru
      _
    // Predicated region
    $region62: #{tpu_custom_call.1} parent=1 // pred_check
      _
    $region63: #{tpu_custom_call.1} parent=1 // pred_check_branch
      %105 = sbr.rel (0) target = $region65
    $region64: #{tpu_custom_call.1} parent=1 // pred_region
      %106 = dma.done [#allocation9], 512
    $region65: #{tpu_custom_call.1} parent=1 // pred_fallthru
      _
    %v107 = vld [vmem:[#allocation2] sm:$0xff]
    %v108 = vld [vmem:[#allocation2 + $0x8] sm:$0xff]
    %v109 = vld [vmem:[%s1] sm:$0x3]
    %v110 = vld [vmem:[%s2] sm:$0x1]
    %v111 = vld [vmem:[%s2 + $0x1] sm:$0x1]
    %v112 = vld [vmem:[#allocation7] sm:$0xff]
    %v113 = vld [vmem:[#allocation7 + $0x8] sm:$0xff]
    %v114 = vld [vmem:[#allocation7 + $0x10] sm:$0xff]
    %v115 = vld [vmem:[#allocation7 + $0x18] sm:$0xff]
    %vm116 = vcmask 261120
    %v118 = vsel %vm116, %v107, 0
    %v121 = vsel %vm116, %v108, 0
    %123 = vmatprep.subr.mxu0 0.0
    %124 = vmatpush1.msra.mxu0 %v112
    %125 = vmatprep.subr.mxu0 0.0
    %126 = vmatpush1.msra.mxu0 %v113
    %127 = vmatprep.subr.mxu0 0.0
    %128 = vmatpush1.msra.mxu0 %v114
    %129 = vmatprep.subr.mxu0 0.0
    %130 = vmatpush1.msra.mxu0 %v115
    %131 = vmatprep.subr.mxu0 0.0
    %132 = vmatpush1.msra.mxu0 0.0
    %133 = vmatprep.subr.mxu0 0.0
    %134 = vmatpush1.msra.mxu0 0.0
    %135 = vmatprep.subr.mxu0 0.0
    %136 = vmatpush1.msra.mxu0 0.0
    %137 = vmatprep.subr.mxu0 0.0
    %138 = vmatpush1.msra.mxu0 0.0
    %139 = vmatprep.subr.mxu0 0.0
    %140 = vmatpush1.msra.mxu0 0.0
    %141 = vmatprep.subr.mxu0 0.0
    %142 = vmatpush1.msra.mxu0 0.0
    %143 = vmatprep.subr.mxu0 0.0
    %144 = vmatpush1.msra.mxu0 0.0
    %145 = vmatprep.subr.mxu0 0.0
    %146 = vmatpush1.msra.mxu0 0.0
    %147 = vmatprep.subr.mxu0 0.0
    %148 = vmatpush1.msra.mxu0 0.0
    %149 = vmatprep.subr.mxu0 0.0
    %150 = vmatpush1.msra.mxu0 0.0
    %151 = vmatprep.subr.mxu0 0.0
    %152 = vmatpush1.msra.mxu0 0.0
    %153 = vmatprep.subr.mxu0 0.0
    %154 = vmatpush1.msra.mxu0 0.0
    %155 = vmatprep.subr.mxu0 0.0
    %156 = vmatpush1.msra.mxu0 0.0
    %157 = vmatprep.subr.mxu0 0.0
    %158 = vmatpush1.msra.mxu0 0.0
    %159 = vmatprep.subr.mxu0 0.0
    %160 = vmatpush1.msra.mxu0 0.0
    %161 = vmatprep.subr.mxu0 0.0
    %162 = vmatpush1.msra.mxu0 0.0
    %163 = vmatprep.subr.mxu0 0.0
    %164 = vmatpush1.msra.mxu0 0.0
    %165 = vmatprep.subr.mxu0 0.0
    %166 = vmatpush1.msra.mxu0 0.0
    %167 = vmatprep.subr.mxu0 0.0
    %168 = vmatpush1.msra.mxu0 0.0
    %169 = vmatprep.subr.mxu0 0.0
    %170 = vmatpush1.msra.mxu0 0.0
    %171 = vmatprep.subr.mxu0 0.0
    %172 = vmatpush1.msra.mxu0 0.0
    %173 = vmatprep.subr.mxu0 0.0
    %174 = vmatpush1.msra.mxu0 0.0
    %175 = vmatprep.subr.mxu0 0.0
    %176 = vmatpush1.msra.mxu0 0.0
    %177 = vmatprep.subr.mxu0 0.0
    %178 = vmatpush1.msra.mxu0 0.0
    %179 = vmatprep.subr.mxu0 0.0
    %180 = vmatpush1.msra.mxu0 0.0
    %181 = vmatprep.subr.mxu0 0.0
    %182 = vmatpush1.msra.mxu0 0.0
    %183 = vmatprep.subr.mxu0 0.0
    %184 = vmatpush1.msra.mxu0 0.0
    %185 = vmatprep.subr.mxu0 0.0
    %186 = vmatpush1.msra.mxu0 0.0
    %187 = vmatprep.mubr.f32.mxu0 0.0
    %188 = vmatmul.mubr.f32.gmra.mrb[0].mxu0 %v118
    %v189 = vpop.f32.mrb[0].mxu0
    %v190 = vadd.f32 0.0, %v189
    %v191 = vpop.f32.mrb[0].mxu0
    %192 = vmatprep.mubr.f32.mxu0 0.0
    %193 = vmatmul.mubr.f32.gmra.mrb[0].mxu0 %v121
    %v194 = vpop.f32.mrb[0].mxu0
    %v195 = vadd.f32 0.0, %v194
    %v196 = vpop.f32.mrb[0].mxu0
    %197 = vdwg.mxu0
    %v198 = vld [vmem:[#allocation5] sm:$0xff]
    %v199 = vld [vmem:[#allocation5 + $0x8] sm:$0xff]
    %v200 = vld [vmem:[#allocation5 + $0x10] sm:$0xff]
    %v201 = vld [vmem:[#allocation5 + $0x18] sm:$0xff]
    %v202 = vld [vmem:[%s4] sm:$0x1]
    %v204 = vlaneseq
    %v205 = vshrl.u32 %v204, 7
    %v206 = vsub.s32 0, %v205
    %v207 = vrot.slane %v202, %v206
    %v210 = vsel %vm116, %v109, 0
    %212 = vmatprep.subr.mxu0 0.0
    %213 = vmatpush1.msra.mxu0 %v198
    %214 = vmatprep.subr.mxu0 0.0
    %215 = vmatpush1.msra.mxu0 %v199
    %216 = vmatprep.subr.mxu0 0.0
    %217 = vmatpush1.msra.mxu0 %v200
    %218 = vmatprep.subr.mxu0 0.0
    %219 = vmatpush1.msra.mxu0 %v201
    %220 = vmatprep.subr.mxu0 0.0
    %221 = vmatpush1.msra.mxu0 0.0
    %222 = vmatprep.subr.mxu0 0.0
    %223 = vmatpush1.msra.mxu0 0.0
    %224 = vmatprep.subr.mxu0 0.0
    %225 = vmatpush1.msra.mxu0 0.0
    %226 = vmatprep.subr.mxu0 0.0
    %227 = vmatpush1.msra.mxu0 0.0
    %228 = vmatprep.subr.mxu0 0.0
    %229 = vmatpush1.msra.mxu0 0.0
    %230 = vmatprep.subr.mxu0 0.0
    %231 = vmatpush1.msra.mxu0 0.0
    %232 = vmatprep.subr.mxu0 0.0
    %233 = vmatpush1.msra.mxu0 0.0
    %234 = vmatprep.subr.mxu0 0.0
    %235 = vmatpush1.msra.mxu0 0.0
    %236 = vmatprep.subr.mxu0 0.0
    %237 = vmatpush1.msra.mxu0 0.0
    %238 = vmatprep.subr.mxu0 0.0
    %239 = vmatpush1.msra.mxu0 0.0
    %240 = vmatprep.subr.mxu0 0.0
    %241 = vmatpush1.msra.mxu0 0.0
    %242 = vmatprep.subr.mxu0 0.0
    %243 = vmatpush1.msra.mxu0 0.0
    %244 = vmatprep.subr.mxu0 0.0
    %245 = vmatpush1.msra.mxu0 0.0
    %246 = vmatprep.subr.mxu0 0.0
    %247 = vmatpush1.msra.mxu0 0.0
    %248 = vmatprep.subr.mxu0 0.0
    %249 = vmatpush1.msra.mxu0 0.0
    %250 = vmatprep.subr.mxu0 0.0
    %251 = vmatpush1.msra.mxu0 0.0
    %252 = vmatprep.subr.mxu0 0.0
    %253 = vmatpush1.msra.mxu0 0.0
    %254 = vmatprep.subr.mxu0 0.0
    %255 = vmatpush1.msra.mxu0 0.0
    %256 = vmatprep.subr.mxu0 0.0
    %257 = vmatpush1.msra.mxu0 0.0
    %258 = vmatprep.subr.mxu0 0.0
    %259 = vmatpush1.msra.mxu0 0.0
    %260 = vmatprep.subr.mxu0 0.0
    %261 = vmatpush1.msra.mxu0 0.0
    %262 = vmatprep.subr.mxu0 0.0
    %263 = vmatpush1.msra.mxu0 0.0
    %264 = vmatprep.subr.mxu0 0.0
    %265 = vmatpush1.msra.mxu0 0.0
    %266 = vmatprep.subr.mxu0 0.0
    %267 = vmatpush1.msra.mxu0 0.0
    %268 = vmatprep.subr.mxu0 0.0
    %269 = vmatpush1.msra.mxu0 0.0
    %270 = vmatprep.subr.mxu0 0.0
    %271 = vmatpush1.msra.mxu0 0.0
    %272 = vmatprep.subr.mxu0 0.0
    %273 = vmatpush1.msra.mxu0 0.0
    %274 = vmatprep.subr.mxu0 0.0
    %275 = vmatpush1.msra.mxu0 0.0
    %276 = vmatprep.mubr.f32.mxu0 0.0
    %277 = vmatmul.mubr.f32.gmra.mrb[0].mxu0 %v210
    %v278 = vpop.f32.mrb[0].mxu0
    %v279 = vadd.f32 %v207, %v278
    %v280 = vpop.f32.mrb[0].mxu0
    %281 = vdwg.mxu0
    %v284 = vunpack.c.l.s4 1966171168
    %v285 = vunpack.c.0.s8 %v284
    %v286 = vlaneseq
    %v287 = vshrl.u32 %v286, 7
    %v288 = vsub.s32 %v285, %v287
    %v289 = vrot.slane %v279, %v288
    %v290 = vcombine.high %v289, %v289
    %v292 = vunpack.c.l.s4 1966171168
    %v293 = vunpack.c.0.s8 %v292
    %v294 = vlaneseq
    %v295 = vshrl.u32 %v294, 7
    %v296 = vsub.s32 %v293, %v295
    %v297 = vrot.slane %v289, %v296
    %v299 = vunpack.c.l.s4 1966171168
    %v300 = vunpack.c.0.s8 %v299
    %v301 = vlaneseq
    %v302 = vshrl.u32 %v301, 7
    %v303 = vsub.s32 %v300, %v302
    %v304 = vrot.slane %v290, %v303
    %v305 = vsel %vm116, %v297, 0
    %v308 = vsel %vm116, %v190, 0
    %310 = vmatprep.subr.mxu0 0.0
    %311 = vmatpush1.xpose.msra.mxu0 %v308
    %312 = vmatprep.subr.mxu0 0.0
    %313 = vmatpush1.xpose.msra.mxu0 0.0
    %314 = vmatprep.subr.mxu0 0.0
    %315 = vmatpush1.xpose.msra.mxu0 0.0
    %316 = vmatprep.subr.mxu0 0.0
    %317 = vmatpush1.xpose.msra.mxu0 0.0
    %318 = vmatprep.subr.mxu0 0.0
    %319 = vmatpush1.xpose.msra.mxu0 0.0
    %320 = vmatprep.subr.mxu0 0.0
    %321 = vmatpush1.xpose.msra.mxu0 0.0
    %322 = vmatprep.subr.mxu0 0.0
    %323 = vmatpush1.xpose.msra.mxu0 0.0
    %324 = vmatprep.subr.mxu0 0.0
    %325 = vmatpush1.xpose.msra.mxu0 0.0
    %326 = vmatprep.subr.mxu0 0.0
    %327 = vmatpush1.xpose.msra.mxu0 0.0
    %328 = vmatprep.subr.mxu0 0.0
    %329 = vmatpush1.xpose.msra.mxu0 0.0
    %330 = vmatprep.subr.mxu0 0.0
    %331 = vmatpush1.xpose.msra.mxu0 0.0
    %332 = vmatprep.subr.mxu0 0.0
    %333 = vmatpush1.xpose.msra.mxu0 0.0
    %334 = vmatprep.subr.mxu0 0.0
    %335 = vmatpush1.xpose.msra.mxu0 0.0
    %336 = vmatprep.subr.mxu0 0.0
    %337 = vmatpush1.xpose.msra.mxu0 0.0
    %338 = vmatprep.subr.mxu0 0.0
    %339 = vmatpush1.xpose.msra.mxu0 0.0
    %340 = vmatprep.subr.mxu0 0.0
    %341 = vmatpush1.xpose.msra.mxu0 0.0
    %342 = vmatprep.subr.mxu0 0.0
    %343 = vmatpush1.xpose.msra.mxu0 0.0
    %344 = vmatprep.subr.mxu0 0.0
    %345 = vmatpush1.xpose.msra.mxu0 0.0
    %346 = vmatprep.subr.mxu0 0.0
    %347 = vmatpush1.xpose.msra.mxu0 0.0
    %348 = vmatprep.subr.mxu0 0.0
    %349 = vmatpush1.xpose.msra.mxu0 0.0
    %350 = vmatprep.subr.mxu0 0.0
    %351 = vmatpush1.xpose.msra.mxu0 0.0
    %352 = vmatprep.subr.mxu0 0.0
    %353 = vmatpush1.xpose.msra.mxu0 0.0
    %354 = vmatprep.subr.mxu0 0.0
    %355 = vmatpush1.xpose.msra.mxu0 0.0
    %356 = vmatprep.subr.mxu0 0.0
    %357 = vmatpush1.xpose.msra.mxu0 0.0
    %358 = vmatprep.subr.mxu0 0.0
    %359 = vmatpush1.xpose.msra.mxu0 0.0
    %360 = vmatprep.subr.mxu0 0.0
    %361 = vmatpush1.xpose.msra.mxu0 0.0
    %362 = vmatprep.subr.mxu0 0.0
    %363 = vmatpush1.xpose.msra.mxu0 0.0
    %364 = vmatprep.subr.mxu0 0.0
    %365 = vmatpush1.xpose.msra.mxu0 0.0
    %366 = vmatprep.subr.mxu0 0.0
    %367 = vmatpush1.xpose.msra.mxu0 0.0
    %368 = vmatprep.subr.mxu0 0.0
    %369 = vmatpush1.xpose.msra.mxu0 0.0
    %370 = vmatprep.subr.mxu0 0.0
    %371 = vmatpush1.xpose.msra.mxu0 0.0
    %372 = vmatprep.subr.mxu0 0.0
    %373 = vmatpush1.xpose.msra.mxu0 0.0
    %374 = vmatprep.mubr.f32.mxu0 0.0
    %375 = vmatmul.mubr.f32.gmra.mrb[0].mxu0 %v305
    %v376 = vpop.f32.mrb[0].mxu0
    %v377 = vadd.f32 0.0, %v376
    %v378 = vpop.f32.mrb[0].mxu0
    %379 = vdwg.mxu0
    %v380 = vsel %vm116, %v304, 0
    %v383 = vsel %vm116, %v195, 0
    %385 = vmatprep.subr.mxu0 0.0
    %386 = vmatpush1.xpose.msra.mxu0 %v383
    %387 = vmatprep.subr.mxu0 0.0
    %388 = vmatpush1.xpose.msra.mxu0 0.0
    %389 = vmatprep.subr.mxu0 0.0
    %390 = vmatpush1.xpose.msra.mxu0 0.0
    %391 = vmatprep.subr.mxu0 0.0
    %392 = vmatpush1.xpose.msra.mxu0 0.0
    %393 = vmatprep.subr.mxu0 0.0
    %394 = vmatpush1.xpose.msra.mxu0 0.0
    %395 = vmatprep.subr.mxu0 0.0
    %396 = vmatpush1.xpose.msra.mxu0 0.0
    %397 = vmatprep.subr.mxu0 0.0
    %398 = vmatpush1.xpose.msra.mxu0 0.0
    %399 = vmatprep.subr.mxu0 0.0
    %400 = vmatpush1.xpose.msra.mxu0 0.0
    %401 = vmatprep.subr.mxu0 0.0
    %402 = vmatpush1.xpose.msra.mxu0 0.0
    %403 = vmatprep.subr.mxu0 0.0
    %404 = vmatpush1.xpose.msra.mxu0 0.0
    %405 = vmatprep.subr.mxu0 0.0
    %406 = vmatpush1.xpose.msra.mxu0 0.0
    %407 = vmatprep.subr.mxu0 0.0
    %408 = vmatpush1.xpose.msra.mxu0 0.0
    %409 = vmatprep.subr.mxu0 0.0
    %410 = vmatpush1.xpose.msra.mxu0 0.0
    %411 = vmatprep.subr.mxu0 0.0
    %412 = vmatpush1.xpose.msra.mxu0 0.0
    %413 = vmatprep.subr.mxu0 0.0
    %414 = vmatpush1.xpose.msra.mxu0 0.0
    %415 = vmatprep.subr.mxu0 0.0
    %416 = vmatpush1.xpose.msra.mxu0 0.0
    %417 = vmatprep.subr.mxu0 0.0
    %418 = vmatpush1.xpose.msra.mxu0 0.0
    %419 = vmatprep.subr.mxu0 0.0
    %420 = vmatpush1.xpose.msra.mxu0 0.0
    %421 = vmatprep.subr.mxu0 0.0
    %422 = vmatpush1.xpose.msra.mxu0 0.0
    %423 = vmatprep.subr.mxu0 0.0
    %424 = vmatpush1.xpose.msra.mxu0 0.0
    %425 = vmatprep.subr.mxu0 0.0
    %426 = vmatpush1.xpose.msra.mxu0 0.0
    %427 = vmatprep.subr.mxu0 0.0
    %428 = vmatpush1.xpose.msra.mxu0 0.0
    %429 = vmatprep.subr.mxu0 0.0
    %430 = vmatpush1.xpose.msra.mxu0 0.0
    %431 = vmatprep.subr.mxu0 0.0
    %432 = vmatpush1.xpose.msra.mxu0 0.0
    %433 = vmatprep.subr.mxu0 0.0
    %434 = vmatpush1.xpose.msra.mxu0 0.0
    %435 = vmatprep.subr.mxu0 0.0
    %436 = vmatpush1.xpose.msra.mxu0 0.0
    %437 = vmatprep.subr.mxu0 0.0
    %438 = vmatpush1.xpose.msra.mxu0 0.0
    %439 = vmatprep.subr.mxu0 0.0
    %440 = vmatpush1.xpose.msra.mxu0 0.0
    %441 = vmatprep.subr.mxu0 0.0
    %442 = vmatpush1.xpose.msra.mxu0 0.0
    %443 = vmatprep.subr.mxu0 0.0
    %444 = vmatpush1.xpose.msra.mxu0 0.0
    %445 = vmatprep.subr.mxu0 0.0
    %446 = vmatpush1.xpose.msra.mxu0 0.0
    %447 = vmatprep.subr.mxu0 0.0
    %448 = vmatpush1.xpose.msra.mxu0 0.0
    %449 = vmatprep.mubr.f32.mxu0 0.0
    %450 = vmatmul.mubr.f32.gmra.mrb[0].mxu0 %v380
    %v451 = vpop.f32.mrb[0].mxu0
    %v452 = vadd.f32 0.0, %v451
    %v453 = vpop.f32.mrb[0].mxu0
    %454 = vdwg.mxu0
    %vm455 = vcmp.eq.s32.totalorder %v110, 0
    %vm456 = vcmp.eq.s32.totalorder %v111, 0
    %v457 = vsel %vm455, -1e+09, %v377
    %v458 = vsel %vm456, -1e+09, %v452
    %vm459 = vcmask 57344
    %v460 = vsel %vm459, %v457, -inf
    %461 = vmax.xlane.f32.xlu0 %v460
    %v462 = vpop.xlane.xlu0 %461
    %v463 = vsel %vm459, %v458, -inf
    %464 = vmax.xlane.f32.xlu0 %v463
    %v465 = vpop.xlane.xlu0 %464
    %v466 = vsub.f32 %v457, %v462
    %v467 = vsub.f32 %v458, %v465
    %v468 = vmul.f32 %v466, 1.442695
    %v469 = vpow.pop %v468
    %v470 = vmul.f32 %v467, 1.442695
    %v471 = vpow.pop %v470
    %v472 = vsel %vm459, %v469, 0.0
    %473 = vadd.xlane.f32.xlu0 %v472
    %v474 = vpop.xlane.xlu0 %473
    %v475 = vsel %vm459, %v471, 0.0
    %476 = vadd.xlane.f32.xlu0 %v475
    %v477 = vpop.xlane.xlu0 %476
    %v478 = vld [vmem:[#allocation8] sm:$0xff]
    %v479 = vld [vmem:[#allocation8 + $0x8] sm:$0xff]
    %v480 = vld [vmem:[#allocation8 + $0x10] sm:$0xff]
    %v481 = vld [vmem:[#allocation8 + $0x18] sm:$0xff]
    %482 = vmatprep.subr.mxu0 0.0
    %483 = vmatpush1.msra.mxu0 %v478
    %484 = vmatprep.subr.mxu0 0.0
    %485 = vmatpush1.msra.mxu0 %v479
    %486 = vmatprep.subr.mxu0 0.0
    %487 = vmatpush1.msra.mxu0 %v480
    %488 = vmatprep.subr.mxu0 0.0
    %489 = vmatpush1.msra.mxu0 %v481
    %490 = vmatprep.subr.mxu0 0.0
    %491 = vmatpush1.msra.mxu0 0.0
    %492 = vmatprep.subr.mxu0 0.0
    %493 = vmatpush1.msra.mxu0 0.0
    %494 = vmatprep.subr.mxu0 0.0
    %495 = vmatpush1.msra.mxu0 0.0
    %496 = vmatprep.subr.mxu0 0.0
    %497 = vmatpush1.msra.mxu0 0.0
    %498 = vmatprep.subr.mxu0 0.0
    %499 = vmatpush1.msra.mxu0 0.0
    %500 = vmatprep.subr.mxu0 0.0
    %501 = vmatpush1.msra.mxu0 0.0
    %502 = vmatprep.subr.mxu0 0.0
    %503 = vmatpush1.msra.mxu0 0.0
    %504 = vmatprep.subr.mxu0 0.0
    %505 = vmatpush1.msra.mxu0 0.0
    %506 = vmatprep.subr.mxu0 0.0
    %507 = vmatpush1.msra.mxu0 0.0
    %508 = vmatprep.subr.mxu0 0.0
    %509 = vmatpush1.msra.mxu0 0.0
    %510 = vmatprep.subr.mxu0 0.0
    %511 = vmatpush1.msra.mxu0 0.0
    %512 = vmatprep.subr.mxu0 0.0
    %513 = vmatpush1.msra.mxu0 0.0
    %514 = vmatprep.subr.mxu0 0.0
    %515 = vmatpush1.msra.mxu0 0.0
    %516 = vmatprep.subr.mxu0 0.0
    %517 = vmatpush1.msra.mxu0 0.0
    %518 = vmatprep.subr.mxu0 0.0
    %519 = vmatpush1.msra.mxu0 0.0
    %520 = vmatprep.subr.mxu0 0.0
    %521 = vmatpush1.msra.mxu0 0.0
    %522 = vmatprep.subr.mxu0 0.0
    %523 = vmatpush1.msra.mxu0 0.0
    %524 = vmatprep.subr.mxu0 0.0
    %525 = vmatpush1.msra.mxu0 0.0
    %526 = vmatprep.subr.mxu0 0.0
    %527 = vmatpush1.msra.mxu0 0.0
    %528 = vmatprep.subr.mxu0 0.0
    %529 = vmatpush1.msra.mxu0 0.0
    %530 = vmatprep.subr.mxu0 0.0
    %531 = vmatpush1.msra.mxu0 0.0
    %532 = vmatprep.subr.mxu0 0.0
    %533 = vmatpush1.msra.mxu0 0.0
    %534 = vmatprep.subr.mxu0 0.0
    %535 = vmatpush1.msra.mxu0 0.0
    %536 = vmatprep.subr.mxu0 0.0
    %537 = vmatpush1.msra.mxu0 0.0
    %538 = vmatprep.subr.mxu0 0.0
    %539 = vmatpush1.msra.mxu0 0.0
    %540 = vmatprep.subr.mxu0 0.0
    %541 = vmatpush1.msra.mxu0 0.0
    %542 = vmatprep.subr.mxu0 0.0
    %543 = vmatpush1.msra.mxu0 0.0
    %544 = vmatprep.subr.mxu0 0.0
    %545 = vmatpush1.msra.mxu0 0.0
    %546 = vmatprep.mubr.f32.mxu0 0.0
    %547 = vmatmul.mubr.f32.gmra.mrb[0].mxu0 %v118
    %v548 = vpop.f32.mrb[0].mxu0
    %v549 = vadd.f32 0.0, %v548
    %v550 = vpop.f32.mrb[0].mxu0
    %551 = vmatprep.mubr.f32.mxu0 0.0
    %552 = vmatmul.mubr.f32.gmra.mrb[0].mxu0 %v121
    %v553 = vpop.f32.mrb[0].mxu0
    %v554 = vadd.f32 0.0, %v553
    %v555 = vpop.f32.mrb[0].mxu0
    %556 = vdwg.mxu0
    %vm557 = vcmask 64512
    %v559 = vsel %vm557, %v469, 0
    %561 = vmatprep.subr.mxu0 0.0
    %562 = vmatpush1.msra.mxu0 %v549
    %563 = vmatprep.subr.mxu0 0.0
    %564 = vmatpush1.msra.mxu0 0.0
    %565 = vmatprep.subr.mxu0 0.0
    %566 = vmatpush1.msra.mxu0 0.0
    %567 = vmatprep.subr.mxu0 0.0
    %568 = vmatpush1.msra.mxu0 0.0
    %569 = vmatprep.subr.mxu0 0.0
    %570 = vmatpush1.msra.mxu0 0.0
    %571 = vmatprep.subr.mxu0 0.0
    %572 = vmatpush1.msra.mxu0 0.0
    %573 = vmatprep.subr.mxu0 0.0
    %574 = vmatpush1.msra.mxu0 0.0
    %575 = vmatprep.subr.mxu0 0.0
    %576 = vmatpush1.msra.mxu0 0.0
    %577 = vmatprep.subr.mxu0 0.0
    %578 = vmatpush1.msra.mxu0 0.0
    %579 = vmatprep.subr.mxu0 0.0
    %580 = vmatpush1.msra.mxu0 0.0
    %581 = vmatprep.subr.mxu0 0.0
    %582 = vmatpush1.msra.mxu0 0.0
    %583 = vmatprep.subr.mxu0 0.0
    %584 = vmatpush1.msra.mxu0 0.0
    %585 = vmatprep.subr.mxu0 0.0
    %586 = vmatpush1.msra.mxu0 0.0
    %587 = vmatprep.subr.mxu0 0.0
    %588 = vmatpush1.msra.mxu0 0.0
    %589 = vmatprep.subr.mxu0 0.0
    %590 = vmatpush1.msra.mxu0 0.0
    %591 = vmatprep.subr.mxu0 0.0
    %592 = vmatpush1.msra.mxu0 0.0
    %593 = vmatprep.subr.mxu0 0.0
    %594 = vmatpush1.msra.mxu0 0.0
    %595 = vmatprep.subr.mxu0 0.0
    %596 = vmatpush1.msra.mxu0 0.0
    %597 = vmatprep.subr.mxu0 0.0
    %598 = vmatpush1.msra.mxu0 0.0
    %599 = vmatprep.subr.mxu0 0.0
    %600 = vmatpush1.msra.mxu0 0.0
    %601 = vmatprep.subr.mxu0 0.0
    %602 = vmatpush1.msra.mxu0 0.0
    %603 = vmatprep.subr.mxu0 0.0
    %604 = vmatpush1.msra.mxu0 0.0
    %605 = vmatprep.subr.mxu0 0.0
    %606 = vmatpush1.msra.mxu0 0.0
    %607 = vmatprep.subr.mxu0 0.0
    %608 = vmatpush1.msra.mxu0 0.0
    %609 = vmatprep.subr.mxu0 0.0
    %610 = vmatpush1.msra.mxu0 0.0
    %611 = vmatprep.subr.mxu0 0.0
    %612 = vmatpush1.msra.mxu0 0.0
    %613 = vmatprep.subr.mxu0 0.0
    %614 = vmatpush1.msra.mxu0 0.0
    %615 = vmatprep.subr.mxu0 0.0
    %616 = vmatpush1.msra.mxu0 0.0
    %617 = vmatprep.subr.mxu0 0.0
    %618 = vmatpush1.msra.mxu0 0.0
    %619 = vmatprep.subr.mxu0 0.0
    %620 = vmatpush1.msra.mxu0 0.0
    %621 = vmatprep.subr.mxu0 0.0
    %622 = vmatpush1.msra.mxu0 0.0
    %623 = vmatprep.subr.mxu0 0.0
    %624 = vmatpush1.msra.mxu0 0.0
    %625 = vmatprep.mubr.f32.mxu0 0.0
    %626 = vmatmul.mubr.f32.gmra.mrb[0].mxu0 %v559
    %v627 = vpop.f32.mrb[0].mxu0
    %v628 = vadd.f32 0.0, %v627
    %v629 = vpop.f32.mrb[0].mxu0
    %630 = vdwg.mxu0
    %v632 = vsel %vm557, %v471, 0
    %634 = vmatprep.subr.mxu0 0.0
    %635 = vmatpush1.msra.mxu0 %v554
    %636 = vmatprep.subr.mxu0 0.0
    %637 = vmatpush1.msra.mxu0 0.0
    %638 = vmatprep.subr.mxu0 0.0
    %639 = vmatpush1.msra.mxu0 0.0
    %640 = vmatprep.subr.mxu0 0.0
    %641 = vmatpush1.msra.mxu0 0.0
    %642 = vmatprep.subr.mxu0 0.0
    %643 = vmatpush1.msra.mxu0 0.0
    %644 = vmatprep.subr.mxu0 0.0
    %645 = vmatpush1.msra.mxu0 0.0
    %646 = vmatprep.subr.mxu0 0.0
    %647 = vmatpush1.msra.mxu0 0.0
    %648 = vmatprep.subr.mxu0 0.0
    %649 = vmatpush1.msra.mxu0 0.0
    %650 = vmatprep.subr.mxu0 0.0
    %651 = vmatpush1.msra.mxu0 0.0
    %652 = vmatprep.subr.mxu0 0.0
    %653 = vmatpush1.msra.mxu0 0.0
    %654 = vmatprep.subr.mxu0 0.0
    %655 = vmatpush1.msra.mxu0 0.0
    %656 = vmatprep.subr.mxu0 0.0
    %657 = vmatpush1.msra.mxu0 0.0
    %658 = vmatprep.subr.mxu0 0.0
    %659 = vmatpush1.msra.mxu0 0.0
    %660 = vmatprep.subr.mxu0 0.0
    %661 = vmatpush1.msra.mxu0 0.0
    %662 = vmatprep.subr.mxu0 0.0
    %663 = vmatpush1.msra.mxu0 0.0
    %664 = vmatprep.subr.mxu0 0.0
    %665 = vmatpush1.msra.mxu0 0.0
    %666 = vmatprep.subr.mxu0 0.0
    %667 = vmatpush1.msra.mxu0 0.0
    %668 = vmatprep.subr.mxu0 0.0
    %669 = vmatpush1.msra.mxu0 0.0
    %670 = vmatprep.subr.mxu0 0.0
    %671 = vmatpush1.msra.mxu0 0.0
    %672 = vmatprep.subr.mxu0 0.0
    %673 = vmatpush1.msra.mxu0 0.0
    %674 = vmatprep.subr.mxu0 0.0
    %675 = vmatpush1.msra.mxu0 0.0
    %676 = vmatprep.subr.mxu0 0.0
    %677 = vmatpush1.msra.mxu0 0.0
    %678 = vmatprep.subr.mxu0 0.0
    %679 = vmatpush1.msra.mxu0 0.0
    %680 = vmatprep.subr.mxu0 0.0
    %681 = vmatpush1.msra.mxu0 0.0
    %682 = vmatprep.subr.mxu0 0.0
    %683 = vmatpush1.msra.mxu0 0.0
    %684 = vmatprep.subr.mxu0 0.0
    %685 = vmatpush1.msra.mxu0 0.0
    %686 = vmatprep.subr.mxu0 0.0
    %687 = vmatpush1.msra.mxu0 0.0
    %688 = vmatprep.subr.mxu0 0.0
    %689 = vmatpush1.msra.mxu0 0.0
    %690 = vmatprep.subr.mxu0 0.0
    %691 = vmatpush1.msra.mxu0 0.0
    %692 = vmatprep.subr.mxu0 0.0
    %693 = vmatpush1.msra.mxu0 0.0
    %694 = vmatprep.subr.mxu0 0.0
    %695 = vmatpush1.msra.mxu0 0.0
    %696 = vmatprep.subr.mxu0 0.0
    %697 = vmatpush1.msra.mxu0 0.0
    %698 = vmatprep.mubr.f32.mxu0 0.0
    %699 = vmatmul.mubr.f32.gmra.mrb[0].mxu0 %v632
    %v700 = vpop.f32.mrb[0].mxu0
    %v701 = vadd.f32 0.0, %v700
    %v702 = vpop.f32.mrb[0].mxu0
    %703 = vdwg.mxu0
    %v704 = vrcp.pop %v474
    %v705 = vmul.f32 %v628, %v704
    %v706 = vrcp.pop %v477
    %v707 = vmul.f32 %v701, %v706
    %v708 = vld [vmem:[#allocation10] sm:$0xff]
    %v709 = vld [vmem:[#allocation10 + $0x8] sm:$0xff]
    %v710 = vld [vmem:[#allocation10 + $0x10] sm:$0xff]
    %v711 = vld [vmem:[#allocation10 + $0x18] sm:$0xff]
    %v712 = vld [vmem:[%s8] sm:$0x1]
    %v714 = vlaneseq
    %v715 = vshrl.u32 %v714, 7
    %v716 = vsub.s32 0, %v715
    %v717 = vrot.slane %v712, %v716
    %v721 = vrot.slane %v707, 7
    %vm722 = vcmask 1041409
    %v723 = vsel %vm722, %v721, %v705
    %v724 = vsel %vm116, %v723, 0
    %726 = vmatprep.subr.mxu0 0.0
    %727 = vmatpush1.msra.mxu0 %v708
    %728 = vmatprep.subr.mxu0 0.0
    %729 = vmatpush1.msra.mxu0 %v709
    %730 = vmatprep.subr.mxu0 0.0
    %731 = vmatpush1.msra.mxu0 %v710
    %732 = vmatprep.subr.mxu0 0.0
    %733 = vmatpush1.msra.mxu0 %v711
    %734 = vmatprep.subr.mxu0 0.0
    %735 = vmatpush1.msra.mxu0 0.0
    %736 = vmatprep.subr.mxu0 0.0
    %737 = vmatpush1.msra.mxu0 0.0
    %738 = vmatprep.subr.mxu0 0.0
    %739 = vmatpush1.msra.mxu0 0.0
    %740 = vmatprep.subr.mxu0 0.0
    %741 = vmatpush1.msra.mxu0 0.0
    %742 = vmatprep.subr.mxu0 0.0
    %743 = vmatpush1.msra.mxu0 0.0
    %744 = vmatprep.subr.mxu0 0.0
    %745 = vmatpush1.msra.mxu0 0.0
    %746 = vmatprep.subr.mxu0 0.0
    %747 = vmatpush1.msra.mxu0 0.0
    %748 = vmatprep.subr.mxu0 0.0
    %749 = vmatpush1.msra.mxu0 0.0
    %750 = vmatprep.subr.mxu0 0.0
    %751 = vmatpush1.msra.mxu0 0.0
    %752 = vmatprep.subr.mxu0 0.0
    %753 = vmatpush1.msra.mxu0 0.0
    %754 = vmatprep.subr.mxu0 0.0
    %755 = vmatpush1.msra.mxu0 0.0
    %756 = vmatprep.subr.mxu0 0.0
    %757 = vmatpush1.msra.mxu0 0.0
    %758 = vmatprep.subr.mxu0 0.0
    %759 = vmatpush1.msra.mxu0 0.0
    %760 = vmatprep.subr.mxu0 0.0
    %761 = vmatpush1.msra.mxu0 0.0
    %762 = vmatprep.subr.mxu0 0.0
    %763 = vmatpush1.msra.mxu0 0.0
    %764 = vmatprep.subr.mxu0 0.0
    %765 = vmatpush1.msra.mxu0 0.0
    %766 = vmatprep.subr.mxu0 0.0
    %767 = vmatpush1.msra.mxu0 0.0
    %768 = vmatprep.subr.mxu0 0.0
    %769 = vmatpush1.msra.mxu0 0.0
    %770 = vmatprep.subr.mxu0 0.0
    %771 = vmatpush1.msra.mxu0 0.0
    %772 = vmatprep.subr.mxu0 0.0
    %773 = vmatpush1.msra.mxu0 0.0
    %774 = vmatprep.subr.mxu0 0.0
    %775 = vmatpush1.msra.mxu0 0.0
    %776 = vmatprep.subr.mxu0 0.0
    %777 = vmatpush1.msra.mxu0 0.0
    %778 = vmatprep.subr.mxu0 0.0
    %779 = vmatpush1.msra.mxu0 0.0
    %780 = vmatprep.subr.mxu0 0.0
    %781 = vmatpush1.msra.mxu0 0.0
    %782 = vmatprep.subr.mxu0 0.0
    %783 = vmatpush1.msra.mxu0 0.0
    %784 = vmatprep.subr.mxu0 0.0
    %785 = vmatpush1.msra.mxu0 0.0
    %786 = vmatprep.subr.mxu0 0.0
    %787 = vmatpush1.msra.mxu0 0.0
    %788 = vmatprep.subr.mxu0 0.0
    %789 = vmatpush1.msra.mxu0 0.0
    %790 = vmatprep.mubr.f32.mxu0 0.0
    %791 = vmatmul.mubr.f32.gmra.mrb[0].mxu0 %v724
    %v792 = vpop.f32.mrb[0].mxu0
    %v793 = vadd.f32 %v717, %v792
    %v794 = vpop.f32.mrb[0].mxu0
    %795 = vdwg.mxu0
    %v796 = vlaneseq
    %v797 = vand.u32 %v796, 127
    %vm798 = vcmp.lt.s32.totalorder %v797, 32
    %v799 = vsel %vm798, %v793, 0.0
    %vm800 = vcmask 1041408
    %v801 = vsel %vm800, %v799, 0.0
    %802 = vadd.xlane.f32.xlu0 %v801
    %v803 = vpop.xlane.xlu0 %802
    %v804 = vmul.f32 %v803, 0.03125
    %v805 = vsub.f32 %v793, %v804
    %v806 = vsel %vm798, %v805, 0.0
    %v807 = vmul.f32 %v806, %v806
    %v808 = vsel %vm800, %v807, 0.0
    %809 = vadd.xlane.f32.xlu0 %v808
    %v810 = vpop.xlane.xlu0 %809
    %v811 = vmul.f32 %v810, 0.03125
    %v812 = vadd.f32 %v811, 1e-05
    %v813 = vrsqrt.pop %v812
    %v814 = vmul.f32 %v805, %v813
    %v815 = vld [vmem:[%s9] sm:$0x1]
    %v817 = vlaneseq
    %v818 = vshrl.u32 %v817, 7
    %v819 = vsub.s32 0, %v818
    %v820 = vrot.slane %v815, %v819
    %v822 = vmul.f32 %v814, %v820
    %v823 = vld [vmem:[%s10] sm:$0x1]
    %v825 = vlaneseq
    %v826 = vshrl.u32 %v825, 7
    %v827 = vsub.s32 0, %v826
    %v828 = vrot.slane %v823, %v827
    %v830 = vadd.f32 %v822, %v828
    %v831 = vmax.f32 %v830, 0.0
    %832 = vst [vmem:[#allocation11] sm:$0x3] %v831
    // Predicated region
    $region66: #{tpu_custom_call.1} parent=1 // pred_check
      _
    $region67: #{tpu_custom_call.1} parent=1 // pred_check_branch
      %834 = sbr.rel (0) target = $region69
    $region68: #{tpu_custom_call.1} parent=1 // pred_region
      %s836 = ssub.s32 32, 32
      %837 = vsyncadd [#allocation4], %s836
      %s839 = sshll.u32 [#allocation11], 4
      %s840 = int_to_ptr.vmem [resolvable:$true] %s839
      %842 = dma.vmem_to_hbm [thread:$0]  %s840, 32, %s11, [#allocation4]
    $region69: #{tpu_custom_call.1} parent=1 // pred_fallthru
      _
    // Predicated region
    $region70: #{tpu_custom_call.1} parent=1 // pred_check
      _
    $region71: #{tpu_custom_call.1} parent=1 // pred_check_branch
      %844 = sbr.rel (0) target = $region73
    $region72: #{tpu_custom_call.1} parent=1 // pred_region
      %845 = dma.done [#allocation4], 32
    $region73: #{tpu_custom_call.1} parent=1 // pred_fallthru
      _
    %846 = vsyncpa [#allocation3], 1
    %847 = vsyncpa [#allocation6], 1
    %848 = vsyncpa [#allocation9], 1
    %849 = vsyncpa [#allocation4], 1

</llo_original>
